<compile_context>
chip_gen: v7x
topology: tpu7x:2x2x1
jax: 0.10.0
libtpu: 0.0.40
codegen_flags: <defaults>
</compile_context>

<pallas_src>
import functools

import jax
import jax.numpy as jnp
from jax.experimental import pallas as pl
from jax.experimental.pallas import tpu as pltpu

_TARGET_ROWS = 256  # aim for ~one full MXU pass worth of M rows per grid step


def _round_up(x, m):
    return (x + m - 1) // m * m


# --------------------------------------------------------------------------
# Kernel: fused (conv3x3 + ReLU) x 2 for one group of images (rows folded
# into the matmul M dimension).
# --------------------------------------------------------------------------
def _fused_double_conv_kernel(x_ref, w1_ref, b1_ref, w2_ref, b2_ref,
                              o_ref, mid_ref):
    # x_ref  : (1, Rg+4, W*Cin)   bf16 rows of the image group (+4 halo rows)
    # w1_ref : (3, W*Cin,  N1)    bf16 banded weights, N1 = round_up(W1*Cout,128)
    # b1_ref : (1, N1)            f32
    # w2_ref : (3, N1, N2)        bf16, N2 = round_up(W2*Cout, 128)
    # b2_ref : (1, N2)            f32
    # o_ref  : (1, Rg, N2)        f32 lane-dense output (multiple of 128 lanes)
    # mid_ref: VMEM (Rg+2, N1)    bf16 scratch; layer-1 activation stays on chip
    m1 = mid_ref.shape[0]   # Rg + 2
    m2 = o_ref.shape[1]     # Rg

    # ---- layer 1: conv(Cin -> Cout) + bias + ReLU (3 MXU matmuls, f32 acc) ----
    acc = jnp.dot(x_ref[0, 0:m1, :], w1_ref[0],
                  preferred_element_type=jnp.float32)
    for kh in (1, 2):
        # TODO(synk): kh slabs start at sublane offsets 1/2; if lower_as_mlir
        # shows relayout copies, fold kh into K via an im2col scratch instead.
        acc = acc + jnp.dot(x_ref[0, kh:kh + m1, :], w1_ref[kh],
                            preferred_element_type=jnp.float32)
    mid_ref[...] = jnp.maximum(acc + b1_ref[...], 0.0).astype(mid_ref.dtype)

    # ---- layer 2: conv(Cout -> Cout) + bias + ReLU, straight to the output ----
    acc2 = jnp.dot(mid_ref[0:m2, :], w2_ref[0],
                   preferred_element_type=jnp.float32)
    for kh in (1, 2):
        acc2 = acc2 + jnp.dot(mid_ref[kh:kh + m2, :], w2_ref[kh],
                              preferred_element_type=jnp.float32)
    o_ref[0] = jnp.maximum(acc2 + b2_ref[...], 0.0).astype(o_ref.dtype)


# --------------------------------------------------------------------------
# One-time weight preprocessing (pure jnp, jit-safe): fold the kw taps and
# the W axis into a banded matmul operand per kh tap, lane-padded to n_pad.
#   out[r, wo*Cout + co] = sum_kh row[r+kh, :] @ A[kh]
# --------------------------------------------------------------------------
def _fold_conv_weight(w_hwio, w_in, n_pad):
    kh_, kw_, cin, cout = w_hwio.shape
    w_out = w_in - kw_ + 1
    sel = jnp.stack([jnp.eye(w_in, w_out, k=-kk, dtype=w_hwio.dtype)
                     for kk in range(kw_)])                       # (kw, Win, Wout)
    a = jnp.einsum('kio,hkcd->hicod', sel, w_hwio)                # (kh,Win,Cin,Wout,Cout)
    a = a.reshape(kh_, w_in * cin, w_out * cout)
    return jnp.pad(a, ((0, 0), (0, 0), (0, n_pad - w_out * cout)))


# --------------------------------------------------------------------------
# Builds a jitted forward(x_nchw) specialized to a given input width.
# Weight folding runs exactly once, outside the forward path.
# --------------------------------------------------------------------------
def make_conv_forward(params, width):
    w1, b1, w2, b2 = params
    cin, cout = w1.shape[2], w1.shape[3]
    w1o, w2o = width - 2, width - 4
    n1 = _round_up(w1o * cout, 128)   # lane-dense intermediate width
    n2 = _round_up(w2o * cout, 128)   # lane-dense output width

    # Folded (banded) weights, columns zero-padded to a multiple of 128 so the
    # intermediate / output stores are full (unmasked) vector stores; bf16
    # operands for the MXU, f32 biases added to the f32 accumulator.
    a1 = _fold_conv_weight(w1, width, n1).astype(jnp.bfloat16)           # (3, W*Cin,  N1)
    a2 = _fold_conv_weight(w2, w1o, n2)                                   # (3, W1*Cout, N2)
    a2 = jnp.pad(a2, ((0, 0), (0, n1 - w1o * cout), (0, 0))).astype(jnp.bfloat16)
    b1t = jnp.pad(jnp.tile(b1, w1o), (0, n1 - w1o * cout)
                  ).reshape(1, n1).astype(jnp.float32)
    b2t = jnp.pad(jnp.tile(b2, w2o), (0, n2 - w2o * cout)
                  ).reshape(1, n2).astype(jnp.float32)

    @jax.jit
    def forward(x_nchw):
        n, cin_, h, w_ = x_nchw.shape
        assert w_ == width and cin_ == cin, "forward specialized to (width, Cin)"
        h2 = h - 4
        kin = w_ * cin

        # NCHW -> NHWC -> fold channels onto the lane axis: (N, H, W*Cin).
        x_lane = jnp.transpose(x_nchw, (0, 2, 3, 1)).reshape(n, h, kin)

        # Fold the batch into the matmul M dimension: pack `g` images per grid
        # step (targeting ~_TARGET_ROWS rows), pad the batch to whole groups,
        # and add 4 zero halo rows per group for the shifted kh slabs.  Rows
        # straddling image boundaries produce garbage that is sliced off below.
        g = max(1, min(n, _TARGET_ROWS // max(h, 1)))
        num_groups = -(-n // g)
        pad_n = num_groups * g - n
        if pad_n:
            x_lane = jnp.pad(x_lane, ((0, pad_n), (0, 0), (0, 0)))
        rg = g * h
        x_grp = jnp.pad(x_lane.reshape(num_groups, rg, kin),
                        ((0, 0), (0, 4), (0, 0))).astype(jnp.bfloat16)

        flops = 2 * num_groups * 3 * ((rg + 2) * kin * n1 + rg * n1 * n2)
        bytes_accessed = (x_grp.size * 2 + (a1.size + a2.size) * 2
                          + (b1t.size + b2t.size) * 4
                          + num_groups * rg * n2 * 4)

        # NOTE: for v7x keep num_groups even when > 1 so both TCs stay busy;
        # at the toy size a single grid step minimizes per-step overhead.
        out_grp = pl.pallas_call(
            _fused_double_conv_kernel,
            out_shape=jax.ShapeDtypeStruct((num_groups, rg, n2), jnp.float32),
            grid=(num_groups,),
            in_specs=[
                pl.BlockSpec((1, rg + 4, kin), lambda i: (i, 0, 0)),
                pl.BlockSpec(a1.shape, lambda i: (0, 0, 0)),
                pl.BlockSpec(b1t.shape, lambda i: (0, 0)),
                pl.BlockSpec(a2.shape, lambda i: (0, 0, 0)),
                pl.BlockSpec(b2t.shape, lambda i: (0, 0)),
            ],
            out_specs=pl.BlockSpec((1, rg, n2), lambda i: (i, 0, 0)),
            scratch_shapes=[pltpu.VMEM((rg + 2, n1), jnp.bfloat16)],
            compiler_params=pltpu.CompilerParams(
                dimension_semantics=("parallel",)),
            cost_estimate=pl.CostEstimate(
                flops=flops, transcendentals=0,
                bytes_accessed=bytes_accessed),
        )(x_grp, a1, b1t, a2, b2t)

        # (G, Rg, N2) -> per-image rows, drop halo/boundary rows and lane pad.
        out = out_grp.reshape(num_groups * g, h, n2)[:n, :h2, :w2o * cout]
        out = out.reshape(n, h2, w2o, cout)
        return jnp.transpose(out, (0, 3, 1, 2))   # NHWC -> NCHW

    return forward


# --------------------------------------------------------------------------
# Parameter init (HWIO weights, PyTorch-style uniform) and pure-JAX reference.
# --------------------------------------------------------------------------
def init_params(key, in_channels, out_channels, dtype=jnp.float32):
    k1, k2, k3, k4 = jax.random.split(key, 4)
    bound1 = 1.0 / jnp.sqrt(in_channels * 9)
    bound2 = 1.0 / jnp.sqrt(out_channels * 9)
    w1 = jax.random.uniform(k1, (3, 3, in_channels, out_channels),
                            dtype, -bound1, bound1)
    b1 = jax.random.uniform(k2, (out_channels,), dtype, -bound1, bound1)
    w2 = jax.random.uniform(k3, (3, 3, out_channels, out_channels),
                            dtype, -bound2, bound2)
    b2 = jax.random.uniform(k4, (out_channels,), dtype, -bound2, bound2)
    return (w1, b1, w2, b2)


def _reference_forward(x_nchw, params):
    w1, b1, w2, b2 = params
    dn = jax.lax.conv_dimension_numbers(x_nchw.shape, (3, 3, 1, 1),
                                        ("NCHW", "HWIO", "NCHW"))

    def conv(x, w, b):
        y = jax.lax.conv_general_dilated(x, w, (1, 1), "VALID",
                                         dimension_numbers=dn)
        return jnp.maximum(y + b[None, :, None, None], 0.0)

    return conv(conv(x_nchw, w1, b1), w2, b2)


if __name__ == "__main__":
    key = jax.random.PRNGKey(0)
    kx, kp = jax.random.split(key)

    batch, in_channels, out_channels, hw = 2, 4, 8, 16
    x = jax.random.normal(kx, (batch, in_channels, hw, hw), jnp.float32)
    params = init_params(kp, in_channels, out_channels)

    forward = make_conv_forward(params, width=hw)
    out = jax.block_until_ready(forward(x))

    ref = _reference_forward(x, params)
    assert out.shape == (batch, out_channels, hw - 4, hw - 4)
    max_err = float(jnp.max(jnp.abs(out - ref)))
    # bf16 MXU operands (f32 accumulation) vs. an f32 reference -> relaxed tol.
    assert jnp.allclose(out, ref, atol=2e-2, rtol=2e-2), max_err

    print("KERNEL_OK")
</pallas_src>

<mosaic_0001>
module attributes {stable_mosaic.version = 11 : i64} {
  func.func @_fused_double_conv_kernel(%arg0: i32, %arg1: memref<1x36x64xbf16, #tpu.memory_space<vmem>>, %arg2: memref<3x64x128xbf16, #tpu.memory_space<vmem>>, %arg3: memref<1x128xf32, #tpu.memory_space<vmem>>, %arg4: memref<3x128x128xbf16, #tpu.memory_space<vmem>>, %arg5: memref<1x128xf32, #tpu.memory_space<vmem>>, %arg6: memref<1x32x128xf32, #tpu.memory_space<vmem>>, %arg7: memref<34x128xbf16, #tpu.memory_space<vmem>>) attributes {dimension_semantics = [#tpu.dimension_semantics<parallel>], iteration_bounds = array<i64: 1>, scalar_prefetch = 0 : i64, scratch_operands = 1 : i64, tpu.core_type = #tpu.core_type<tc>, window_params = [{transform_indices = @transform_0, window_bounds = array<i64: 1, 36, 64>}, {pipeline_mode = #tpu.pipeline_mode<synchronous>, transform_indices = @transform_1, window_bounds = array<i64: 3, 64, 128>}, {pipeline_mode = #tpu.pipeline_mode<synchronous>, transform_indices = @transform_2, window_bounds = array<i64: 1, 128>}, {pipeline_mode = #tpu.pipeline_mode<synchronous>, transform_indices = @transform_3, window_bounds = array<i64: 3, 128, 128>}, {pipeline_mode = #tpu.pipeline_mode<synchronous>, transform_indices = @transform_4, window_bounds = array<i64: 1, 128>}, {transform_indices = @transform_5, window_bounds = array<i64: 1, 32, 128>}]} {
    %c0 = arith.constant 0 : index
    %c0_0 = arith.constant 0 : index
    %c0_1 = arith.constant 0 : index
    %0 = vector.load %arg1[%c0, %c0_0, %c0_1] : memref<1x36x64xbf16, #tpu.memory_space<vmem>>, vector<1x34x64xbf16>
    %1 = vector.shape_cast %0 : vector<1x34x64xbf16> to vector<34x64xbf16>
    %c0_2 = arith.constant 0 : index
    %c0_3 = arith.constant 0 : index
    %c0_4 = arith.constant 0 : index
    %2 = vector.load %arg2[%c0_2, %c0_3, %c0_4] : memref<3x64x128xbf16, #tpu.memory_space<vmem>>, vector<1x64x128xbf16>
    %3 = vector.shape_cast %2 : vector<1x64x128xbf16> to vector<64x128xbf16>
    %cst = arith.constant dense<0.000000e+00> : vector<34x128xf32>
    %4 = tpu.matmul %1, %3, %cst {dimension_numbers = #tpu.dot_dimension_numbers<[1], [0], [0], [1], [0, 0, 1, 1], [], []>} : vector<34x64xbf16>, vector<64x128xbf16>, vector<34x128xf32> -> vector<34x128xf32>
    %c0_5 = arith.constant 0 : index
    %c1 = arith.constant 1 : index
    %c0_6 = arith.constant 0 : index
    %5 = vector.load %arg1[%c0_5, %c1, %c0_6] : memref<1x36x64xbf16, #tpu.memory_space<vmem>>, vector<1x34x64xbf16>
    %6 = vector.shape_cast %5 : vector<1x34x64xbf16> to vector<34x64xbf16>
    %c1_7 = arith.constant 1 : index
    %c0_8 = arith.constant 0 : index
    %c0_9 = arith.constant 0 : index
    %7 = vector.load %arg2[%c1_7, %c0_8, %c0_9] : memref<3x64x128xbf16, #tpu.memory_space<vmem>>, vector<1x64x128xbf16>
    %8 = vector.shape_cast %7 : vector<1x64x128xbf16> to vector<64x128xbf16>
    %cst_10 = arith.constant dense<0.000000e+00> : vector<34x128xf32>
    %9 = tpu.matmul %6, %8, %cst_10 {dimension_numbers = #tpu.dot_dimension_numbers<[1], [0], [0], [1], [0, 0, 1, 1], [], []>} : vector<34x64xbf16>, vector<64x128xbf16>, vector<34x128xf32> -> vector<34x128xf32>
    %10 = arith.addf %4, %9 : vector<34x128xf32>
    %c0_11 = arith.constant 0 : index
    %c2 = arith.constant 2 : index
    %c0_12 = arith.constant 0 : index
    %11 = vector.load %arg1[%c0_11, %c2, %c0_12] : memref<1x36x64xbf16, #tpu.memory_space<vmem>>, vector<1x34x64xbf16>
    %12 = vector.shape_cast %11 : vector<1x34x64xbf16> to vector<34x64xbf16>
    %c2_13 = arith.constant 2 : index
    %c0_14 = arith.constant 0 : index
    %c0_15 = arith.constant 0 : index
    %13 = vector.load %arg2[%c2_13, %c0_14, %c0_15] : memref<3x64x128xbf16, #tpu.memory_space<vmem>>, vector<1x64x128xbf16>
    %14 = vector.shape_cast %13 : vector<1x64x128xbf16> to vector<64x128xbf16>
    %cst_16 = arith.constant dense<0.000000e+00> : vector<34x128xf32>
    %15 = tpu.matmul %12, %14, %cst_16 {dimension_numbers = #tpu.dot_dimension_numbers<[1], [0], [0], [1], [0, 0, 1, 1], [], []>} : vector<34x64xbf16>, vector<64x128xbf16>, vector<34x128xf32> -> vector<34x128xf32>
    %16 = arith.addf %10, %15 : vector<34x128xf32>
    %c0_17 = arith.constant 0 : index
    %c0_18 = arith.constant 0 : index
    %17 = vector.load %arg3[%c0_17, %c0_18] : memref<1x128xf32, #tpu.memory_space<vmem>>, vector<1x128xf32>
    %18 = vector.broadcast %17 : vector<1x128xf32> to vector<34x128xf32>
    %19 = arith.addf %16, %18 : vector<34x128xf32>
    %cst_19 = arith.constant 0.000000e+00 : f32
    %20 = vector.broadcast %cst_19 : f32 to vector<34x128xf32>
    %21 = arith.maximumf %19, %20 : vector<34x128xf32>
    %22 = arith.truncf %21 : vector<34x128xf32> to vector<34x128xbf16>
    %c0_20 = arith.constant 0 : index
    %c0_21 = arith.constant 0 : index
    %23 = vector.load %arg7[%c0_20, %c0_21] : memref<34x128xbf16, #tpu.memory_space<vmem>>, vector<34x128xbf16>
    tpu.vector_store %arg7[%c0_20, %c0_21], %22 {strides = array<i32>} : memref<34x128xbf16, #tpu.memory_space<vmem>>, vector<34x128xbf16>,
    %c0_22 = arith.constant 0 : index
    %c0_23 = arith.constant 0 : index
    %24 = vector.load %arg7[%c0_22, %c0_23] : memref<34x128xbf16, #tpu.memory_space<vmem>>, vector<32x128xbf16>
    %c0_24 = arith.constant 0 : index
    %c0_25 = arith.constant 0 : index
    %c0_26 = arith.constant 0 : index
    %25 = vector.load %arg4[%c0_24, %c0_25, %c0_26] : memref<3x128x128xbf16, #tpu.memory_space<vmem>>, vector<1x128x128xbf16>
    %26 = vector.shape_cast %25 : vector<1x128x128xbf16> to vector<128x128xbf16>
    %cst_27 = arith.constant dense<0.000000e+00> : vector<32x128xf32>
    %27 = tpu.matmul %24, %26, %cst_27 {dimension_numbers = #tpu.dot_dimension_numbers<[1], [0], [0], [1], [0, 0, 1, 1], [], []>} : vector<32x128xbf16>, vector<128x128xbf16>, vector<32x128xf32> -> vector<32x128xf32>
    %c1_28 = arith.constant 1 : index
    %c0_29 = arith.constant 0 : index
    %28 = vector.load %arg7[%c1_28, %c0_29] : memref<34x128xbf16, #tpu.memory_space<vmem>>, vector<32x128xbf16>
    %c1_30 = arith.constant 1 : index
    %c0_31 = arith.constant 0 : index
    %c0_32 = arith.constant 0 : index
    %29 = vector.load %arg4[%c1_30, %c0_31, %c0_32] : memref<3x128x128xbf16, #tpu.memory_space<vmem>>, vector<1x128x128xbf16>
    %30 = vector.shape_cast %29 : vector<1x128x128xbf16> to vector<128x128xbf16>
    %cst_33 = arith.constant dense<0.000000e+00> : vector<32x128xf32>
    %31 = tpu.matmul %28, %30, %cst_33 {dimension_numbers = #tpu.dot_dimension_numbers<[1], [0], [0], [1], [0, 0, 1, 1], [], []>} : vector<32x128xbf16>, vector<128x128xbf16>, vector<32x128xf32> -> vector<32x128xf32>
    %32 = arith.addf %27, %31 : vector<32x128xf32>
    %c2_34 = arith.constant 2 : index
    %c0_35 = arith.constant 0 : index
    %33 = vector.load %arg7[%c2_34, %c0_35] : memref<34x128xbf16, #tpu.memory_space<vmem>>, vector<32x128xbf16>
    %c2_36 = arith.constant 2 : index
    %c0_37 = arith.constant 0 : index
    %c0_38 = arith.constant 0 : index
    %34 = vector.load %arg4[%c2_36, %c0_37, %c0_38] : memref<3x128x128xbf16, #tpu.memory_space<vmem>>, vector<1x128x128xbf16>
    %35 = vector.shape_cast %34 : vector<1x128x128xbf16> to vector<128x128xbf16>
    %cst_39 = arith.constant dense<0.000000e+00> : vector<32x128xf32>
    %36 = tpu.matmul %33, %35, %cst_39 {dimension_numbers = #tpu.dot_dimension_numbers<[1], [0], [0], [1], [0, 0, 1, 1], [], []>} : vector<32x128xbf16>, vector<128x128xbf16>, vector<32x128xf32> -> vector<32x128xf32>
    %37 = arith.addf %32, %36 : vector<32x128xf32>
    %c0_40 = arith.constant 0 : index
    %c0_41 = arith.constant 0 : index
    %38 = vector.load %arg5[%c0_40, %c0_41] : memref<1x128xf32, #tpu.memory_space<vmem>>, vector<1x128xf32>
    %39 = vector.broadcast %38 : vector<1x128xf32> to vector<32x128xf32>
    %40 = arith.addf %37, %39 : vector<32x128xf32>
    %cst_42 = arith.constant 0.000000e+00 : f32
    %41 = vector.broadcast %cst_42 : f32 to vector<32x128xf32>
    %42 = arith.maximumf %40, %41 : vector<32x128xf32>
    %c0_43 = arith.constant 0 : index
    %c0_44 = arith.constant 0 : index
    %c0_45 = arith.constant 0 : index
    %43 = vector.load %arg6[%c0_43, %c0_44, %c0_45] : memref<1x32x128xf32, #tpu.memory_space<vmem>>, vector<1x32x128xf32>
    %44 = vector.shape_cast %43 : vector<1x32x128xf32> to vector<32x128xf32>
    %45 = vector.shape_cast %42 : vector<32x128xf32> to vector<1x32x128xf32>
    tpu.vector_store %arg6[%c0_43, %c0_44, %c0_45], %45 {strides = array<i32>} : memref<1x32x128xf32, #tpu.memory_space<vmem>>, vector<1x32x128xf32>,
    return
  }
  func.func @transform_0(%arg0: i32) -> (i32, i32, i32) {
    %c0_i32 = arith.constant 0 : i32
    %c0_i32_0 = arith.constant 0 : i32
    %c0_i32_1 = arith.constant 0 : i32
    return %arg0, %c0_i32, %c0_i32_0 : i32, i32, i32
  }
  func.func @transform_1(%arg0: i32) -> (i32, i32, i32) {
    %c0_i32 = arith.constant 0 : i32
    %c0_i32_0 = arith.constant 0 : i32
    %c0_i32_1 = arith.constant 0 : i32
    %c0_i32_2 = arith.constant 0 : i32
    return %c0_i32, %c0_i32_0, %c0_i32_1 : i32, i32, i32
  }
  func.func @transform_2(%arg0: i32) -> (i32, i32) {
    %c0_i32 = arith.constant 0 : i32
    %c0_i32_0 = arith.constant 0 : i32
    %c0_i32_1 = arith.constant 0 : i32
    return %c0_i32, %c0_i32_0 : i32, i32
  }
  func.func @transform_3(%arg0: i32) -> (i32, i32, i32) {
    %c0_i32 = arith.constant 0 : i32
    %c0_i32_0 = arith.constant 0 : i32
    %c0_i32_1 = arith.constant 0 : i32
    %c0_i32_2 = arith.constant 0 : i32
    return %c0_i32, %c0_i32_0, %c0_i32_1 : i32, i32, i32
  }
  func.func @transform_4(%arg0: i32) -> (i32, i32) {
    %c0_i32 = arith.constant 0 : i32
    %c0_i32_0 = arith.constant 0 : i32
    %c0_i32_1 = arith.constant 0 : i32
    return %c0_i32, %c0_i32_0 : i32, i32
  }
  func.func @transform_5(%arg0: i32) -> (i32, i32, i32) {
    %c0_i32 = arith.constant 0 : i32
    %c0_i32_0 = arith.constant 0 : i32
    %c0_i32_1 = arith.constant 0 : i32
    return %arg0, %c0_i32, %c0_i32_0 : i32, i32, i32
  }
}

</mosaic_0001>

<llo_original>
// kernel: forward.1
$region0: #{forward.1}
  #allocation0 [shape = 'u32[]', space=smem, size = 0x4, offset = 0x4, fixed_abs, tag = 'smem constant byte address 0x4 - core index']
  #allocation1 [shape = 'u32[144,128]{1,0:T(1,128)}', space=vmem, size = 0x12000, scoped, tag = 'internal scratch']
  #allocation2 [shape = 'bf16[34,128]{1,0:T(8,128)(2,1)}', space=vmem, size = 0x2800, scoped, tag = 'scratch operand']
  %s0 = inlined_call_operand.vmem [shape: bf16[1,36,64], index: 0, kind: input, shape index: {}]
  %s1 = inlined_call_operand.vmem [shape: bf16[3,64,128], index: 1, kind: input, shape index: {}]
  %s2 = inlined_call_operand.vmem [shape: f32[1,128], index: 2, kind: input, shape index: {}]
  %s3 = inlined_call_operand.vmem [shape: bf16[3,128,128], index: 3, kind: input, shape index: {}]
  %s4 = inlined_call_operand.vmem [shape: f32[1,128], index: 4, kind: input, shape index: {}]
  %s5 = inlined_call_operand.vmem [shape: f32[1,32,128], index: 5, kind: output, shape index: {}]
  %s6 = sld [smem:[#allocation0]]
  $region30: #{forward.1} parent=0
    _
  %s8 = ssub.s32 1, %s6
  %s9 = scalar_select 0, %s8, %s6
  // Predicated region
  $region2: #{forward.1} parent=0 // pred_check
    _
  $region3: #{forward.1} parent=0 // pred_check_branch
    %11 = sbr.rel (0) target = $region5
  $region4: #{forward.1} parent=0 // pred_region
    _
  $region5: #{forward.1} parent=0 // pred_fallthru
    _
  // Predicated region
  $region6: #{forward.1} parent=0 // pred_check
    _
  $region7: #{forward.1} parent=0 // pred_check_branch
    %13 = sbr.rel (0) target = $region9
  $region8: #{forward.1} parent=0 // pred_region
    _
  $region9: #{forward.1} parent=0 // pred_fallthru
    _
  // Predicated region
  $region10: #{forward.1} parent=0 // pred_check
    _
  $region11: #{forward.1} parent=0 // pred_check_branch
    %15 = sbr.rel (0) target = $region13
  $region12: #{forward.1} parent=0 // pred_region
    _
  $region13: #{forward.1} parent=0 // pred_fallthru
    _
  // Predicated region
  $region14: #{forward.1} parent=0 // pred_check
    _
  $region15: #{forward.1} parent=0 // pred_check_branch
    %17 = sbr.rel (0) target = $region17
  $region16: #{forward.1} parent=0 // pred_region
    _
  $region17: #{forward.1} parent=0 // pred_fallthru
    _
  // Predicated region
  $region18: #{forward.1} parent=0 // pred_check
    _
  $region19: #{forward.1} parent=0 // pred_check_branch
    %19 = sbr.rel (0) target = $region21
  $region20: #{forward.1} parent=0 // pred_region
    _
  $region21: #{forward.1} parent=0 // pred_fallthru
    _
  %v21 = vld [vmem:[%s0] sm:$0xf]
  %v22 = vld [vmem:[%s0 + $0x4] sm:$0xf]
  %v23 = vld [vmem:[%s0 + $0x8] sm:$0xf]
  %v24 = vld [vmem:[%s0 + $0xc] sm:$0xf]
  %v25 = vld [vmem:[%s0 + $0x10] sm:$0x1]
  %v26 = vld [vmem:[%s1] sm:$0xf]
  %v27 = vld [vmem:[%s1 + $0x4] sm:$0xf]
  %v28 = vld [vmem:[%s1 + $0x8] sm:$0xf]
  %v29 = vld [vmem:[%s1 + $0xc] sm:$0xf]
  %v30 = vld [vmem:[%s1 + $0x10] sm:$0xf]
  %v31 = vld [vmem:[%s1 + $0x14] sm:$0xf]
  %v32 = vld [vmem:[%s1 + $0x18] sm:$0xf]
  %v33 = vld [vmem:[%s1 + $0x1c] sm:$0xf]
  %v34 = vld [vmem:[%s0 + $0x10] sm:$0x3]
  %s35 = scalar_lea.vmem %s1, 32
  %v36 = vld [vmem:[%s35] sm:$0xf]
  %v37 = vld [vmem:[%s35 + $0x4] sm:$0xf]
  %v38 = vld [vmem:[%s35 + $0x8] sm:$0xf]
  %v39 = vld [vmem:[%s35 + $0xc] sm:$0xf]
  %v40 = vld [vmem:[%s35 + $0x10] sm:$0xf]
  %v41 = vld [vmem:[%s35 + $0x14] sm:$0xf]
  %v42 = vld [vmem:[%s35 + $0x18] sm:$0xf]
  %v43 = vld [vmem:[%s35 + $0x1c] sm:$0xf]
  %v49 = vunpack.c.l.b16 %v21
  %v50 = vunpack.c.l.b16 %v22
  %v51 = vunpack.c.l.b16 %v23
  %v52 = vunpack.c.l.b16 %v24
  %v53 = vunpack.c.l.b16 %v34
  %v54 = vpack.c.b16 %v50, %v49
  %v55 = vpack.c.b16 %v52, %v51
  %v56 = vpack.c.b16 %v53, %v53
  %vm57 = vsmask.f32 7424
  %v59 = vshrl.u32 %v54, 16
  %v61 = vshll.u32 %v54, 16
  %v63 = vrot.slane %v61, 1
  %v64 = vor.u32 %v59, %v63
  %v66 = vshll.u32 %v55, 16
  %v68 = vrot.slane %v66, 1
  %v69 = vsel %vm57, %v64, %v68
  %v70 = vshrl.u32 %v55, 16
  %v72 = vor.u32 %v70, %v68
  %v74 = vshll.u32 %v56, 16
  %v76 = vrot.slane %v74, 1
  %v77 = vsel %vm57, %v72, %v76
  %v78 = vshrl.u32 %v56, 16
  %v80 = vor.u32 %v78, %v76
  %v89 = vunpack.c.l.b16 %v36
  %v90 = vunpack.c.l.b16 %v37
  %v91 = vunpack.c.l.b16 %v38
  %v92 = vunpack.c.l.b16 %v39
  %v93 = vunpack.c.l.b16 %v40
  %v94 = vunpack.c.l.b16 %v41
  %v95 = vunpack.c.l.b16 %v42
  %v96 = vunpack.c.l.b16 %v43
  %v97 = vpack.c.b16 %v90, %v89
  %v98 = vpack.c.b16 %v92, %v91
  %v99 = vpack.c.b16 %v94, %v93
  %v100 = vpack.c.b16 %v96, %v95
  %vm105 = vcmask 523264
  %v107 = vsel %vm105, %v69, 0
  %v110 = vsel %vm105, %v77, 0
  %v113 = vsel %vm105, %v80, 0
  %115 = vmatprep.subr.bf16.mxu0 0
  %116 = vmatpush1.bf16.msra.mxu0 %v97
  %117 = vmatprep.subr.bf16.mxu0 0
  %118 = vmatpush1.bf16.msra.mxu0 %v98
  %119 = vmatprep.subr.bf16.mxu0 0
  %120 = vmatpush1.bf16.msra.mxu0 %v99
  %121 = vmatprep.subr.bf16.mxu0 0
  %122 = vmatpush1.bf16.msra.mxu0 %v100
  %123 = vmatprep.subr.bf16.mxu0 0
  %124 = vmatpush1.bf16.msra.mxu0 0
  %125 = vmatprep.subr.bf16.mxu0 0
  %126 = vmatpush1.bf16.msra.mxu0 0
  %127 = vmatprep.subr.bf16.mxu0 0
  %128 = vmatpush1.bf16.msra.mxu0 0
  %129 = vmatprep.subr.bf16.mxu0 0
  %130 = vmatpush1.bf16.msra.mxu0 0
  %131 = vmatprep.subr.bf16.mxu0 0
  %132 = vmatpush1.bf16.msra.mxu0 0
  %133 = vmatprep.subr.bf16.mxu0 0
  %134 = vmatpush1.bf16.msra.mxu0 0
  %135 = vmatprep.subr.bf16.mxu0 0
  %136 = vmatpush1.bf16.msra.mxu0 0
  %137 = vmatprep.subr.bf16.mxu0 0
  %138 = vmatpush1.bf16.msra.mxu0 0
  %139 = vmatprep.subr.bf16.mxu0 0
  %140 = vmatpush1.bf16.msra.mxu0 0
  %141 = vmatprep.subr.bf16.mxu0 0
  %142 = vmatpush1.bf16.msra.mxu0 0
  %143 = vmatprep.subr.bf16.mxu0 0
  %144 = vmatpush1.bf16.msra.mxu0 0
  %145 = vmatprep.subr.bf16.mxu0 0
  %146 = vmatpush1.bf16.msra.mxu0 0
  %147 = vmatprep.mubr.bf16.mxu0 0
  %148 = vmatmul.mubr.bf16.gmra.mrb[0].mxu0 %v107
  %v149 = vpop.f32.mrb[0].mxu0
  %v150 = vadd.f32 0.0, %v149
  %v151 = vpop.f32.mrb[0].mxu0
  %v152 = vpop.f32.mrb[0].mxu0
  %v153 = vadd.f32 0.0, %v152
  %v154 = vpop.f32.mrb[0].mxu0
  %155 = vmatprep.mubr.bf16.mxu0 0
  %156 = vmatmul.mubr.bf16.gmra.mrb[0].mxu0 %v110
  %v157 = vpop.f32.mrb[0].mxu0
  %v158 = vadd.f32 0.0, %v157
  %v159 = vpop.f32.mrb[0].mxu0
  %v160 = vpop.f32.mrb[0].mxu0
  %v161 = vadd.f32 0.0, %v160
  %v162 = vpop.f32.mrb[0].mxu0
  %163 = vmatprep.mubr.bf16.mxu0 0
  %164 = vmatmul.mubr.bf16.gmra.mrb[0].mxu0 %v113
  %v165 = vpop.f32.mrb[0].mxu0
  %v166 = vadd.f32 0.0, %v165
  %v167 = vpop.f32.mrb[0].mxu0
  %v168 = vpop.f32.mrb[0].mxu0
  %v169 = vpop.f32.mrb[0].mxu0
  %170 = vdwg.mxu0
  %v172 = vunpack.c.l.b16 %v25
  %v173 = vpack.c.b16 %v172, %v172
  %v182 = vunpack.c.l.b16 %v26
  %v183 = vunpack.c.l.b16 %v27
  %v184 = vunpack.c.l.b16 %v28
  %v185 = vunpack.c.l.b16 %v29
  %v186 = vunpack.c.l.b16 %v30
  %v187 = vunpack.c.l.b16 %v31
  %v188 = vunpack.c.l.b16 %v32
  %v189 = vunpack.c.l.b16 %v33
  %v190 = vpack.c.b16 %v183, %v182
  %v191 = vpack.c.b16 %v185, %v184
  %v192 = vpack.c.b16 %v187, %v186
  %v193 = vpack.c.b16 %v189, %v188
  %v198 = vsel %vm105, %v54, 0
  %v200 = vsel %vm105, %v55, 0
  %v203 = vsel %vm105, %v173, 0
  %205 = vmatprep.subr.bf16.mxu0 0
  %206 = vmatpush1.bf16.msra.mxu0 %v190
  %207 = vmatprep.subr.bf16.mxu0 0
  %208 = vmatpush1.bf16.msra.mxu0 %v191
  %209 = vmatprep.subr.bf16.mxu0 0
  %210 = vmatpush1.bf16.msra.mxu0 %v192
  %211 = vmatprep.subr.bf16.mxu0 0
  %212 = vmatpush1.bf16.msra.mxu0 %v193
  %213 = vmatprep.subr.bf16.mxu0 0
  %214 = vmatpush1.bf16.msra.mxu0 0
  %215 = vmatprep.subr.bf16.mxu0 0
  %216 = vmatpush1.bf16.msra.mxu0 0
  %217 = vmatprep.subr.bf16.mxu0 0
  %218 = vmatpush1.bf16.msra.mxu0 0
  %219 = vmatprep.subr.bf16.mxu0 0
  %220 = vmatpush1.bf16.msra.mxu0 0
  %221 = vmatprep.subr.bf16.mxu0 0
  %222 = vmatpush1.bf16.msra.mxu0 0
  %223 = vmatprep.subr.bf16.mxu0 0
  %224 = vmatpush1.bf16.msra.mxu0 0
  %225 = vmatprep.subr.bf16.mxu0 0
  %226 = vmatpush1.bf16.msra.mxu0 0
  %227 = vmatprep.subr.bf16.mxu0 0
  %228 = vmatpush1.bf16.msra.mxu0 0
  %229 = vmatprep.subr.bf16.mxu0 0
  %230 = vmatpush1.bf16.msra.mxu0 0
  %231 = vmatprep.subr.bf16.mxu0 0
  %232 = vmatpush1.bf16.msra.mxu0 0
  %233 = vmatprep.subr.bf16.mxu0 0
  %234 = vmatpush1.bf16.msra.mxu0 0
  %235 = vmatprep.subr.bf16.mxu0 0
  %236 = vmatpush1.bf16.msra.mxu0 0
  %237 = vmatprep.mubr.bf16.mxu0 0
  %238 = vmatmul.mubr.bf16.gmra.mrb[0].mxu0 %v198
  %v239 = vpop.f32.mrb[0].mxu0
  %v240 = vadd.f32 %v150, %v239
  %v241 = vpop.f32.mrb[0].mxu0
  %v242 = vpop.f32.mrb[0].mxu0
  %v243 = vadd.f32 %v153, %v242
  %v244 = vpop.f32.mrb[0].mxu0
  %245 = vmatprep.mubr.bf16.mxu0 0
  %246 = vmatmul.mubr.bf16.gmra.mrb[0].mxu0 %v200
  %v247 = vpop.f32.mrb[0].mxu0
  %v248 = vadd.f32 %v158, %v247
  %v249 = vpop.f32.mrb[0].mxu0
  %v250 = vpop.f32.mrb[0].mxu0
  %v251 = vadd.f32 %v161, %v250
  %v252 = vpop.f32.mrb[0].mxu0
  %253 = vmatprep.mubr.bf16.mxu0 0
  %254 = vmatmul.mubr.bf16.gmra.mrb[0].mxu0 %v203
  %v255 = vpop.f32.mrb[0].mxu0
  %v256 = vadd.f32 %v166, %v255
  %v257 = vpop.f32.mrb[0].mxu0
  %v258 = vpop.f32.mrb[0].mxu0
  %v259 = vpop.f32.mrb[0].mxu0
  %260 = vdwg.mxu0
  %v261 = vld [vmem:[%s0] sm:$0xe]
  %s262 = scalar_lea.vmem %s1, 64
  %v263 = vld [vmem:[%s262] sm:$0xf]
  %v264 = vld [vmem:[%s262 + $0x4] sm:$0xf]
  %v265 = vld [vmem:[%s262 + $0x8] sm:$0xf]
  %v266 = vld [vmem:[%s262 + $0xc] sm:$0xf]
  %v267 = vld [vmem:[%s262 + $0x10] sm:$0xf]
  %v268 = vld [vmem:[%s262 + $0x14] sm:$0xf]
  %v269 = vld [vmem:[%s262 + $0x18] sm:$0xf]
  %v270 = vld [vmem:[%s262 + $0x1c] sm:$0xf]
  %v272 = vunpack.c.l.b16 %v261
  %v273 = vpack.c.b16 %v50, %v272
  %vm274 = vcmask 1046528
  %v275 = vrot.slane %v273, 1
  %v276 = vrot.slane %v55, 1
  %v277 = vsel %vm274, %v275, %v276
  %v278 = vrot.slane %v56, 1
  %v279 = vsel %vm274, %v276, %v278
  %v288 = vunpack.c.l.b16 %v263
  %v289 = vunpack.c.l.b16 %v264
  %v290 = vunpack.c.l.b16 %v265
  %v291 = vunpack.c.l.b16 %v266
  %v292 = vunpack.c.l.b16 %v267
  %v293 = vunpack.c.l.b16 %v268
  %v294 = vunpack.c.l.b16 %v269
  %v295 = vunpack.c.l.b16 %v270
  %v296 = vpack.c.b16 %v289, %v288
  %v297 = vpack.c.b16 %v291, %v290
  %v298 = vpack.c.b16 %v293, %v292
  %v299 = vpack.c.b16 %v295, %v294
  %v305 = vsel %vm105, %v277, 0
  %v308 = vsel %vm105, %v279, 0
  %v311 = vsel %vm105, %v278, 0
  %313 = vmatprep.subr.bf16.mxu0 0
  %314 = vmatpush1.bf16.msra.mxu0 %v296
  %315 = vmatprep.subr.bf16.mxu0 0
  %316 = vmatpush1.bf16.msra.mxu0 %v297
  %317 = vmatprep.subr.bf16.mxu0 0
  %318 = vmatpush1.bf16.msra.mxu0 %v298
  %319 = vmatprep.subr.bf16.mxu0 0
  %320 = vmatpush1.bf16.msra.mxu0 %v299
  %321 = vmatprep.subr.bf16.mxu0 0
  %322 = vmatpush1.bf16.msra.mxu0 0
  %323 = vmatprep.subr.bf16.mxu0 0
  %324 = vmatpush1.bf16.msra.mxu0 0
  %325 = vmatprep.subr.bf16.mxu0 0
  %326 = vmatpush1.bf16.msra.mxu0 0
  %327 = vmatprep.subr.bf16.mxu0 0
  %328 = vmatpush1.bf16.msra.mxu0 0
  %329 = vmatprep.subr.bf16.mxu0 0
  %330 = vmatpush1.bf16.msra.mxu0 0
  %331 = vmatprep.subr.bf16.mxu0 0
  %332 = vmatpush1.bf16.msra.mxu0 0
  %333 = vmatprep.subr.bf16.mxu0 0
  %334 = vmatpush1.bf16.msra.mxu0 0
  %335 = vmatprep.subr.bf16.mxu0 0
  %336 = vmatpush1.bf16.msra.mxu0 0
  %337 = vmatprep.subr.bf16.mxu0 0
  %338 = vmatpush1.bf16.msra.mxu0 0
  %339 = vmatprep.subr.bf16.mxu0 0
  %340 = vmatpush1.bf16.msra.mxu0 0
  %341 = vmatprep.subr.bf16.mxu0 0
  %342 = vmatpush1.bf16.msra.mxu0 0
  %343 = vmatprep.subr.bf16.mxu0 0
  %344 = vmatpush1.bf16.msra.mxu0 0
  %345 = vmatprep.mubr.bf16.mxu0 0
  %346 = vmatmul.mubr.bf16.gmra.mrb[0].mxu0 %v305
  %v347 = vpop.f32.mrb[0].mxu0
  %v348 = vadd.f32 0.0, %v347
  %v349 = vpop.f32.mrb[0].mxu0
  %v350 = vpop.f32.mrb[0].mxu0
  %v351 = vadd.f32 0.0, %v350
  %v352 = vpop.f32.mrb[0].mxu0
  %353 = vmatprep.mubr.bf16.mxu0 0
  %354 = vmatmul.mubr.bf16.gmra.mrb[0].mxu0 %v308
  %v355 = vpop.f32.mrb[0].mxu0
  %v356 = vadd.f32 0.0, %v355
  %v357 = vpop.f32.mrb[0].mxu0
  %v358 = vpop.f32.mrb[0].mxu0
  %v359 = vadd.f32 0.0, %v358
  %v360 = vpop.f32.mrb[0].mxu0
  %361 = vmatprep.mubr.bf16.mxu0 0
  %362 = vmatmul.mubr.bf16.gmra.mrb[0].mxu0 %v311
  %v363 = vpop.f32.mrb[0].mxu0
  %v364 = vadd.f32 0.0, %v363
  %v365 = vpop.f32.mrb[0].mxu0
  %v366 = vpop.f32.mrb[0].mxu0
  %v367 = vpop.f32.mrb[0].mxu0
  %368 = vdwg.mxu0
  %v369 = vadd.f32 %v240, %v348
  %v370 = vadd.f32 %v243, %v351
  %v371 = vadd.f32 %v248, %v356
  %v372 = vadd.f32 %v251, %v359
  %v373 = vadd.f32 %v256, %v364
  %v374 = vld [vmem:[%s2] sm:$0x1]
  %v376 = vlaneseq
  %v377 = vshrl.u32 %v376, 7
  %v378 = vsub.s32 0, %v377
  %v379 = vrot.slane %v374, %v378
  %v381 = vadd.f32 %v369, %v379
  %v382 = vadd.f32 %v370, %v379
  %v383 = vadd.f32 %v371, %v379
  %v384 = vadd.f32 %v372, %v379
  %v385 = vadd.f32 %v373, %v379
  %v386 = vmax.f32 %v381, 0.0
  %v387 = vmax.f32 %v382, 0.0
  %v388 = vmax.f32 %v383, 0.0
  %v389 = vmax.f32 %v384, 0.0
  %v390 = vmax.f32 %v385, 0.0
  %v391 = vpack.c.bf16 %v387, %v386
  %v392 = vpack.c.bf16 %v389, %v388
  %v393 = vpack.c.bf16 %v390, %v390
  %v397 = vunpack.c.l.b16 %v391
  %v398 = vunpack.c.h.b16 %v391
  %v399 = vunpack.c.l.b16 %v392
  %v400 = vunpack.c.h.b16 %v392
  %v401 = vunpack.c.l.b16 %v393
  %v402 = vpack.c.b16 %v397, %v397
  %v403 = vpack.c.b16 %v398, %v398
  %v404 = vpack.c.b16 %v399, %v399
  %v405 = vpack.c.b16 %v400, %v400
  %v406 = vpack.c.b16 %v401, %v401
  %412 = vst [vmem:[#allocation2] sm:$0xf] %v402
  %413 = vst [vmem:[#allocation2 + $0x4] sm:$0xf] %v403
  %414 = vst [vmem:[#allocation2 + $0x8] sm:$0xf] %v404
  %415 = vst [vmem:[#allocation2 + $0xc] sm:$0xf] %v405
  %416 = vst [vmem:[#allocation2 + $0x10] sm:$0x1] %v406
  %v417 = vld [vmem:[#allocation2] sm:$0xf]
  %v418 = vld [vmem:[#allocation2 + $0x4] sm:$0xf]
  %v419 = vld [vmem:[#allocation2 + $0x8] sm:$0xf]
  %v420 = vld [vmem:[#allocation2 + $0xc] sm:$0xf]
  %v421 = vld [vmem:[%s3] sm:$0xf]
  %v422 = vld [vmem:[%s3 + $0x4] sm:$0xf]
  %v423 = vld [vmem:[%s3 + $0x8] sm:$0xf]
  %v424 = vld [vmem:[%s3 + $0xc] sm:$0xf]
  %v425 = vld [vmem:[%s3 + $0x10] sm:$0xf]
  %v426 = vld [vmem:[%s3 + $0x14] sm:$0xf]
  %v427 = vld [vmem:[%s3 + $0x18] sm:$0xf]
  %v428 = vld [vmem:[%s3 + $0x1c] sm:$0xf]
  %v429 = vld [vmem:[%s3 + $0x20] sm:$0xf]
  %v430 = vld [vmem:[%s3 + $0x24] sm:$0xf]
  %v431 = vld [vmem:[%s3 + $0x28] sm:$0xf]
  %v432 = vld [vmem:[%s3 + $0x2c] sm:$0xf]
  %v433 = vld [vmem:[%s3 + $0x30] sm:$0xf]
  %v434 = vld [vmem:[%s3 + $0x34] sm:$0xf]
  %v435 = vld [vmem:[%s3 + $0x38] sm:$0xf]
  %v436 = vld [vmem:[%s3 + $0x3c] sm:$0xf]
  %v437 = vld [vmem:[#allocation2 + $0x10] sm:$0x1]
  %s438 = scalar_lea.vmem %s3, 64
  %v439 = vld [vmem:[%s438] sm:$0xf]
  %v440 = vld [vmem:[%s438 + $0x4] sm:$0xf]
  %v441 = vld [vmem:[%s438 + $0x8] sm:$0xf]
  %v442 = vld [vmem:[%s438 + $0xc] sm:$0xf]
  %v443 = vld [vmem:[%s438 + $0x10] sm:$0xf]
  %v444 = vld [vmem:[%s438 + $0x14] sm:$0xf]
  %v445 = vld [vmem:[%s438 + $0x18] sm:$0xf]
  %v446 = vld [vmem:[%s438 + $0x1c] sm:$0xf]
  %v447 = vld [vmem:[%s438 + $0x20] sm:$0xf]
  %v448 = vld [vmem:[%s438 + $0x24] sm:$0xf]
  %v449 = vld [vmem:[%s438 + $0x28] sm:$0xf]
  %v450 = vld [vmem:[%s438 + $0x2c] sm:$0xf]
  %v451 = vld [vmem:[%s438 + $0x30] sm:$0xf]
  %v452 = vld [vmem:[%s438 + $0x34] sm:$0xf]
  %v453 = vld [vmem:[%s438 + $0x38] sm:$0xf]
  %v454 = vld [vmem:[%s438 + $0x3c] sm:$0xf]
  %v460 = vunpack.c.l.b16 %v417
  %v461 = vunpack.c.l.b16 %v418
  %v462 = vunpack.c.l.b16 %v419
  %v463 = vunpack.c.l.b16 %v420
  %v464 = vunpack.c.l.b16 %v437
  %v465 = vpack.c.b16 %v461, %v460
  %v466 = vpack.c.b16 %v463, %v462
  %v467 = vpack.c.b16 %v464, %v464
  %v469 = vshrl.u32 %v465, 16
  %v471 = vshll.u32 %v465, 16
  %v473 = vrot.slane %v471, 1
  %v474 = vor.u32 %v469, %v473
  %v476 = vshll.u32 %v466, 16
  %v478 = vrot.slane %v476, 1
  %v479 = vsel %vm57, %v474, %v478
  %v480 = vshrl.u32 %v466, 16
  %v482 = vor.u32 %v480, %v478
  %v484 = vshll.u32 %v467, 16
  %v486 = vrot.slane %v484, 1
  %v487 = vsel %vm57, %v482, %v486
  %v506 = vunpack.c.l.b16 %v439
  %v507 = vunpack.c.l.b16 %v440
  %v508 = vunpack.c.l.b16 %v441
  %v509 = vunpack.c.l.b16 %v442
  %v510 = vunpack.c.l.b16 %v443
  %v511 = vunpack.c.l.b16 %v444
  %v512 = vunpack.c.l.b16 %v445
  %v513 = vunpack.c.l.b16 %v446
  %v514 = vunpack.c.l.b16 %v447
  %v515 = vunpack.c.l.b16 %v448
  %v516 = vunpack.c.l.b16 %v449
  %v517 = vunpack.c.l.b16 %v450
  %v518 = vunpack.c.l.b16 %v451
  %v519 = vunpack.c.l.b16 %v452
  %v520 = vunpack.c.l.b16 %v453
  %v521 = vunpack.c.l.b16 %v454
  %v522 = vpack.c.b16 %v507, %v506
  %v523 = vpack.c.b16 %v509, %v508
  %v524 = vpack.c.b16 %v511, %v510
  %v525 = vpack.c.b16 %v513, %v512
  %v526 = vpack.c.b16 %v515, %v514
  %v527 = vpack.c.b16 %v517, %v516
  %v528 = vpack.c.b16 %v519, %v518
  %v529 = vpack.c.b16 %v521, %v520
  %538 = vmatprep.subr.bf16.mxu0 0
  %539 = vmatpush1.bf16.msra.mxu0 %v522
  %540 = vmatprep.subr.bf16.mxu0 0
  %541 = vmatpush1.bf16.msra.mxu0 %v523
  %542 = vmatprep.subr.bf16.mxu0 0
  %543 = vmatpush1.bf16.msra.mxu0 %v524
  %544 = vmatprep.subr.bf16.mxu0 0
  %545 = vmatpush1.bf16.msra.mxu0 %v525
  %546 = vmatprep.subr.bf16.mxu0 0
  %547 = vmatpush1.bf16.msra.mxu0 %v526
  %548 = vmatprep.subr.bf16.mxu0 0
  %549 = vmatpush1.bf16.msra.mxu0 %v527
  %550 = vmatprep.subr.bf16.mxu0 0
  %551 = vmatpush1.bf16.msra.mxu0 %v528
  %552 = vmatprep.subr.bf16.mxu0 0
  %553 = vmatpush1.bf16.msra.mxu0 %v529
  %554 = vmatprep.subr.bf16.mxu0 0
  %555 = vmatpush1.bf16.msra.mxu0 0
  %556 = vmatprep.subr.bf16.mxu0 0
  %557 = vmatpush1.bf16.msra.mxu0 0
  %558 = vmatprep.subr.bf16.mxu0 0
  %559 = vmatpush1.bf16.msra.mxu0 0
  %560 = vmatprep.subr.bf16.mxu0 0
  %561 = vmatpush1.bf16.msra.mxu0 0
  %562 = vmatprep.subr.bf16.mxu0 0
  %563 = vmatpush1.bf16.msra.mxu0 0
  %564 = vmatprep.subr.bf16.mxu0 0
  %565 = vmatpush1.bf16.msra.mxu0 0
  %566 = vmatprep.subr.bf16.mxu0 0
  %567 = vmatpush1.bf16.msra.mxu0 0
  %568 = vmatprep.subr.bf16.mxu0 0
  %569 = vmatpush1.bf16.msra.mxu0 0
  %570 = vmatprep.mubr.bf16.mxu0 0
  %571 = vmatmul.mubr.bf16.gmra.mrb[0].mxu0 %v479
  %v572 = vpop.f32.mrb[0].mxu0
  %v573 = vadd.f32 0.0, %v572
  %v574 = vpop.f32.mrb[0].mxu0
  %v575 = vpop.f32.mrb[0].mxu0
  %v576 = vadd.f32 0.0, %v575
  %v577 = vpop.f32.mrb[0].mxu0
  %578 = vmatprep.mubr.bf16.mxu0 0
  %579 = vmatmul.mubr.bf16.gmra.mrb[0].mxu0 %v487
  %v580 = vpop.f32.mrb[0].mxu0
  %v581 = vadd.f32 0.0, %v580
  %v582 = vpop.f32.mrb[0].mxu0
  %v583 = vpop.f32.mrb[0].mxu0
  %v584 = vadd.f32 0.0, %v583
  %v585 = vpop.f32.mrb[0].mxu0
  %586 = vdwg.mxu0
  %v605 = vunpack.c.l.b16 %v421
  %v606 = vunpack.c.l.b16 %v422
  %v607 = vunpack.c.l.b16 %v423
  %v608 = vunpack.c.l.b16 %v424
  %v609 = vunpack.c.l.b16 %v425
  %v610 = vunpack.c.l.b16 %v426
  %v611 = vunpack.c.l.b16 %v427
  %v612 = vunpack.c.l.b16 %v428
  %v613 = vunpack.c.l.b16 %v429
  %v614 = vunpack.c.l.b16 %v430
  %v615 = vunpack.c.l.b16 %v431
  %v616 = vunpack.c.l.b16 %v432
  %v617 = vunpack.c.l.b16 %v433
  %v618 = vunpack.c.l.b16 %v434
  %v619 = vunpack.c.l.b16 %v435
  %v620 = vunpack.c.l.b16 %v436
  %v621 = vpack.c.b16 %v606, %v605
  %v622 = vpack.c.b16 %v608, %v607
  %v623 = vpack.c.b16 %v610, %v609
  %v624 = vpack.c.b16 %v612, %v611
  %v625 = vpack.c.b16 %v614, %v613
  %v626 = vpack.c.b16 %v616, %v615
  %v627 = vpack.c.b16 %v618, %v617
  %v628 = vpack.c.b16 %v620, %v619
  %637 = vmatprep.subr.bf16.mxu0 0
  %638 = vmatpush1.bf16.msra.mxu0 %v621
  %639 = vmatprep.subr.bf16.mxu0 0
  %640 = vmatpush1.bf16.msra.mxu0 %v622
  %641 = vmatprep.subr.bf16.mxu0 0
  %642 = vmatpush1.bf16.msra.mxu0 %v623
  %643 = vmatprep.subr.bf16.mxu0 0
  %644 = vmatpush1.bf16.msra.mxu0 %v624
  %645 = vmatprep.subr.bf16.mxu0 0
  %646 = vmatpush1.bf16.msra.mxu0 %v625
  %647 = vmatprep.subr.bf16.mxu0 0
  %648 = vmatpush1.bf16.msra.mxu0 %v626
  %649 = vmatprep.subr.bf16.mxu0 0
  %650 = vmatpush1.bf16.msra.mxu0 %v627
  %651 = vmatprep.subr.bf16.mxu0 0
  %652 = vmatpush1.bf16.msra.mxu0 %v628
  %653 = vmatprep.subr.bf16.mxu0 0
  %654 = vmatpush1.bf16.msra.mxu0 0
  %655 = vmatprep.subr.bf16.mxu0 0
  %656 = vmatpush1.bf16.msra.mxu0 0
  %657 = vmatprep.subr.bf16.mxu0 0
  %658 = vmatpush1.bf16.msra.mxu0 0
  %659 = vmatprep.subr.bf16.mxu0 0
  %660 = vmatpush1.bf16.msra.mxu0 0
  %661 = vmatprep.subr.bf16.mxu0 0
  %662 = vmatpush1.bf16.msra.mxu0 0
  %663 = vmatprep.subr.bf16.mxu0 0
  %664 = vmatpush1.bf16.msra.mxu0 0
  %665 = vmatprep.subr.bf16.mxu0 0
  %666 = vmatpush1.bf16.msra.mxu0 0
  %667 = vmatprep.subr.bf16.mxu0 0
  %668 = vmatpush1.bf16.msra.mxu0 0
  %669 = vmatprep.mubr.bf16.mxu0 0
  %670 = vmatmul.mubr.bf16.gmra.mrb[0].mxu0 %v465
  %v671 = vpop.f32.mrb[0].mxu0
  %v672 = vadd.f32 %v573, %v671
  %v673 = vpop.f32.mrb[0].mxu0
  %v674 = vpop.f32.mrb[0].mxu0
  %v675 = vadd.f32 %v576, %v674
  %v676 = vpop.f32.mrb[0].mxu0
  %677 = vmatprep.mubr.bf16.mxu0 0
  %678 = vmatmul.mubr.bf16.gmra.mrb[0].mxu0 %v466
  %v679 = vpop.f32.mrb[0].mxu0
  %v680 = vadd.f32 %v581, %v679
  %v681 = vpop.f32.mrb[0].mxu0
  %v682 = vpop.f32.mrb[0].mxu0
  %v683 = vadd.f32 %v584, %v682
  %v684 = vpop.f32.mrb[0].mxu0
  %685 = vdwg.mxu0
  %v686 = vld [vmem:[#allocation2] sm:$0xe]
  %s687 = scalar_lea.vmem %s3, 128
  %v688 = vld [vmem:[%s687] sm:$0xf]
  %v689 = vld [vmem:[%s687 + $0x4] sm:$0xf]
  %v690 = vld [vmem:[%s687 + $0x8] sm:$0xf]
  %v691 = vld [vmem:[%s687 + $0xc] sm:$0xf]
  %v692 = vld [vmem:[%s687 + $0x10] sm:$0xf]
  %v693 = vld [vmem:[%s687 + $0x14] sm:$0xf]
  %v694 = vld [vmem:[%s687 + $0x18] sm:$0xf]
  %v695 = vld [vmem:[%s687 + $0x1c] sm:$0xf]
  %v696 = vld [vmem:[%s687 + $0x20] sm:$0xf]
  %v697 = vld [vmem:[%s687 + $0x24] sm:$0xf]
  %v698 = vld [vmem:[%s687 + $0x28] sm:$0xf]
  %v699 = vld [vmem:[%s687 + $0x2c] sm:$0xf]
  %v700 = vld [vmem:[%s687 + $0x30] sm:$0xf]
  %v701 = vld [vmem:[%s687 + $0x34] sm:$0xf]
  %v702 = vld [vmem:[%s687 + $0x38] sm:$0xf]
  %v703 = vld [vmem:[%s687 + $0x3c] sm:$0xf]
  %v705 = vunpack.c.l.b16 %v686
  %v706 = vpack.c.b16 %v461, %v705
  %v707 = vrot.slane %v706, 1
  %v708 = vrot.slane %v466, 1
  %v709 = vsel %vm274, %v707, %v708
  %v710 = vrot.slane %v467, 1
  %v711 = vsel %vm274, %v708, %v710
  %v730 = vunpack.c.l.b16 %v688
  %v731 = vunpack.c.l.b16 %v689
  %v732 = vunpack.c.l.b16 %v690
  %v733 = vunpack.c.l.b16 %v691
  %v734 = vunpack.c.l.b16 %v692
  %v735 = vunpack.c.l.b16 %v693
  %v736 = vunpack.c.l.b16 %v694
  %v737 = vunpack.c.l.b16 %v695
  %v738 = vunpack.c.l.b16 %v696
  %v739 = vunpack.c.l.b16 %v697
  %v740 = vunpack.c.l.b16 %v698
  %v741 = vunpack.c.l.b16 %v699
  %v742 = vunpack.c.l.b16 %v700
  %v743 = vunpack.c.l.b16 %v701
  %v744 = vunpack.c.l.b16 %v702
  %v745 = vunpack.c.l.b16 %v703
  %v746 = vpack.c.b16 %v731, %v730
  %v747 = vpack.c.b16 %v733, %v732
  %v748 = vpack.c.b16 %v735, %v734
  %v749 = vpack.c.b16 %v737, %v736
  %v750 = vpack.c.b16 %v739, %v738
  %v751 = vpack.c.b16 %v741, %v740
  %v752 = vpack.c.b16 %v743, %v742
  %v753 = vpack.c.b16 %v745, %v744
  %762 = vmatprep.subr.bf16.mxu0 0
  %763 = vmatpush1.bf16.msra.mxu0 %v746
  %764 = vmatprep.subr.bf16.mxu0 0
  %765 = vmatpush1.bf16.msra.mxu0 %v747
  %766 = vmatprep.subr.bf16.mxu0 0
  %767 = vmatpush1.bf16.msra.mxu0 %v748
  %768 = vmatprep.subr.bf16.mxu0 0
  %769 = vmatpush1.bf16.msra.mxu0 %v749
  %770 = vmatprep.subr.bf16.mxu0 0
  %771 = vmatpush1.bf16.msra.mxu0 %v750
  %772 = vmatprep.subr.bf16.mxu0 0
  %773 = vmatpush1.bf16.msra.mxu0 %v751
  %774 = vmatprep.subr.bf16.mxu0 0
  %775 = vmatpush1.bf16.msra.mxu0 %v752
  %776 = vmatprep.subr.bf16.mxu0 0
  %777 = vmatpush1.bf16.msra.mxu0 %v753
  %778 = vmatprep.subr.bf16.mxu0 0
  %779 = vmatpush1.bf16.msra.mxu0 0
  %780 = vmatprep.subr.bf16.mxu0 0
  %781 = vmatpush1.bf16.msra.mxu0 0
  %782 = vmatprep.subr.bf16.mxu0 0
  %783 = vmatpush1.bf16.msra.mxu0 0
  %784 = vmatprep.subr.bf16.mxu0 0
  %785 = vmatpush1.bf16.msra.mxu0 0
  %786 = vmatprep.subr.bf16.mxu0 0
  %787 = vmatpush1.bf16.msra.mxu0 0
  %788 = vmatprep.subr.bf16.mxu0 0
  %789 = vmatpush1.bf16.msra.mxu0 0
  %790 = vmatprep.subr.bf16.mxu0 0
  %791 = vmatpush1.bf16.msra.mxu0 0
  %792 = vmatprep.subr.bf16.mxu0 0
  %793 = vmatpush1.bf16.msra.mxu0 0
  %794 = vmatprep.mubr.bf16.mxu0 0
  %795 = vmatmul.mubr.bf16.gmra.mrb[0].mxu0 %v709
  %v796 = vpop.f32.mrb[0].mxu0
  %v797 = vadd.f32 0.0, %v796
  %v798 = vpop.f32.mrb[0].mxu0
  %v799 = vpop.f32.mrb[0].mxu0
  %v800 = vadd.f32 0.0, %v799
  %v801 = vpop.f32.mrb[0].mxu0
  %802 = vmatprep.mubr.bf16.mxu0 0
  %803 = vmatmul.mubr.bf16.gmra.mrb[0].mxu0 %v711
  %v804 = vpop.f32.mrb[0].mxu0
  %v805 = vadd.f32 0.0, %v804
  %v806 = vpop.f32.mrb[0].mxu0
  %v807 = vpop.f32.mrb[0].mxu0
  %v808 = vadd.f32 0.0, %v807
  %v809 = vpop.f32.mrb[0].mxu0
  %810 = vdwg.mxu0
  %v811 = vadd.f32 %v672, %v797
  %v812 = vadd.f32 %v675, %v800
  %v813 = vadd.f32 %v680, %v805
  %v814 = vadd.f32 %v683, %v808
  %v815 = vld [vmem:[%s4] sm:$0x1]
  %v817 = vlaneseq
  %v818 = vshrl.u32 %v817, 7
  %v819 = vsub.s32 0, %v818
  %v820 = vrot.slane %v815, %v819
  %v822 = vadd.f32 %v811, %v820
  %v823 = vadd.f32 %v812, %v820
  %v824 = vadd.f32 %v813, %v820
  %v825 = vadd.f32 %v814, %v820
  %v826 = vmax.f32 %v822, 0.0
  %v827 = vmax.f32 %v823, 0.0
  %v828 = vmax.f32 %v824, 0.0
  %v829 = vmax.f32 %v825, 0.0
  %830 = vst [vmem:[%s5] sm:$0xff] %v826
  %831 = vst [vmem:[%s5 + $0x8] sm:$0xff] %v827
  %832 = vst [vmem:[%s5 + $0x10] sm:$0xff] %v828
  %833 = vst [vmem:[%s5 + $0x18] sm:$0xff] %v829
  // Predicated region
  $region22: #{forward.1} parent=0 // pred_check
    _
  $region23: #{forward.1} parent=0 // pred_check_branch
    %835 = sbr.rel (0) target = $region25
  $region24: #{forward.1} parent=0 // pred_region
    _
  $region25: #{forward.1} parent=0 // pred_fallthru
    _
  // Predicated region
  $region26: #{forward.1} parent=0 // pred_check
    _
  $region27: #{forward.1} parent=0 // pred_check_branch
    %837 = sbr.rel (0) target = $region29
  $region28: #{forward.1} parent=0 // pred_region
    _
  $region29: #{forward.1} parent=0 // pred_fallthru
    _

</llo_original>
